<compile_context>
chip_gen: v5e
topology: v5e:2x2
jax: 0.10.0
libtpu: 0.0.40
codegen_flags: <defaults>
</compile_context>

<pallas_src>
import jax
import jax.numpy as jnp
from jax import lax
from jax.experimental import pallas as pl
from jax.experimental.pallas import tpu as pltpu


def _self_attn_kernel(x_ref, k_ref, v_ref, wq_ref, bq_ref, gamma_ref,
                      out_ref, attn_ref):
    # Per-(batch, query-tile) block.
    x = x_ref[0]                                    # (TQ, C) f32  query rows + residual
    k = k_ref[0]                                    # (N, C8) f32  precomputed keys
    v = v_ref[0]                                    # (N, C)  bf16 precomputed values

    # Q projection: 1x1 conv == per-position channel matmul (+ bias). f32 —
    # tiny contraction (C -> C8) and it feeds the returned attention map.
    q = jnp.dot(x, wq_ref[...], preferred_element_type=jnp.float32) + bq_ref[...]   # (TQ, C8)

    # scores = Q K^T, contracting the channel dim of both operands directly
    # (no explicit k transpose materialized).
    s = lax.dot_general(q, k, (((1,), (1,)), ((), ())),
                        preferred_element_type=jnp.float32)        # (TQ, N)

    # Exact per-row softmax, written straight into the attention output block
    # so only one (TQ, N) f32 slab stays live (minimal VALU passes / VMEM).
    m = jnp.max(s, axis=-1, keepdims=True)
    p = jnp.exp(s - m)                               # (TQ, N)
    attn_ref[0] = p
    l = jnp.sum(p, axis=-1, keepdims=True)           # (TQ, 1)
    inv_l = pl.reciprocal(l, approx=False)           # exact: feeds returned attn
    attn_ref[0] = attn_ref[0] * inv_l                # normalize in place

    # P@V: bf16 operands on the MXU, f32 accumulation. p is already
    # normalized, so no post-scale of the (TQ, C) result is needed.
    o = jnp.dot(attn_ref[0].astype(jnp.bfloat16), v,
                preferred_element_type=jnp.float32)               # (TQ, C)

    out_ref[0] = gamma_ref[0] * o + x                # gamma scalar from SMEM


def _vmem_budget_bytes():
    """Usable VMEM per generation: detected capacity minus ~25% headroom for
    compiler internals / pipeline buffers (v7x 64 MiB -> ~48 MiB, v5e/v6e
    128 MiB -> ~96 MiB). Falls back to the v7x-safe 48 MiB if detection fails."""
    cap = None
    try:
        cap = getattr(pltpu.get_tpu_info(), "vmem_capacity_bytes", None)
    except Exception:
        cap = None
    if not cap:
        cap = 64 * 1024 * 1024
    return int(cap) * 3 // 4


def _pick_tq(N, C, C8, budget_bytes):
    """Largest query tile (multiple of 8, <=512, dividing N) whose full VMEM
    footprint fits the budget. Footprint counts the double-buffered x / K / V /
    out / attn blocks, the weight tiles and the in-kernel (TQ,N) temporaries."""
    fixed = (2 * (N * C8 * 4        # K block (f32), double-buffered
                  + N * C * 2       # V block (bf16), double-buffered
                  + C * C8 * 4)     # Wq^T
             + 4 * 8 * 128 * 4)     # bq / gamma / misc padded-tile slack
    per_row = (2 * C * 4            # x block (double-buffered)
               + 2 * C * 4          # out block (double-buffered)
               + 2 * N * 4          # attn block (double-buffered)
               + N * 4              # s intermediate (f32)
               + N * 2              # bf16 copy of p feeding P@V
               + (C8 + C) * 4)      # q / o intermediates
    cands = [t for t in range(8, min(N, 512) + 1, 8) if N % t == 0]
    if not cands:
        return N                    # tiny / irregular N: full-extent tile (always legal)
    for tq in sorted(cands, reverse=True):
        if fixed + tq * per_row <= budget_bytes:
            return tq
    return cands[0]                 # smallest legal tile (K/V residency is irreducible)


def self_attention_pallas(x_nchw, wq, bq, wk, bk, wv, bv, gamma):
    """x_nchw: (B, C, W, H) float32.  Conv weights wq/wk: (C//8, C), wv: (C, C)."""
    B, C, W, H = x_nchw.shape
    N = W * H
    C8 = wq.shape[0]

    budget = _vmem_budget_bytes()
    TQ = _pick_tq(N, C, C8, budget)
    NT = N // TQ

    # NCHW -> (B, N, C): flatten spatial, channels last.
    x_bnc = jnp.transpose(x_nchw.reshape(B, C, N), (0, 2, 1)).astype(jnp.float32)

    # K / V projections hoisted out of the per-query-tile loop: computed once
    # per batch with plain XLA matmuls and streamed into the kernel as inputs.
    k_bno = (jnp.einsum('bnc,oc->bno', x_bnc, wk.astype(jnp.float32))
             + bk.astype(jnp.float32)[None, None, :])                       # (B, N, C8) f32
    v_bno = (jnp.einsum('bnc,oc->bno', x_bnc, wv.astype(jnp.float32))
             + bv.astype(jnp.float32)[None, None, :]).astype(jnp.bfloat16)  # (B, N, C)  bf16

    wq_t = wq.T.astype(jnp.float32)                 # (C, C8): kernel computes x @ Wq^T
    bq2 = bq.reshape(1, C8).astype(jnp.float32)
    gamma1 = jnp.asarray(gamma, jnp.float32).reshape(1,)

    out_bnc, attn = pl.pallas_call(
        _self_attn_kernel,
        out_shape=(
            jax.ShapeDtypeStruct((B, N, C), jnp.float32),
            # TODO(synk): emitting attn in bf16 would halve the dominant HBM
            # write on v5e/v6e, but that is an API/accuracy decision for the
            # caller; kept f32 to match the module's returned attention map.
            jax.ShapeDtypeStruct((B, N, N), jnp.float32),
        ),
        grid_spec=pltpu.PrefetchScalarGridSpec(
            num_scalar_prefetch=0,
            grid=(B, NT),
            in_specs=[
                pl.BlockSpec((1, TQ, C), lambda b, i: (b, i, 0)),   # x (query rows + residual)
                pl.BlockSpec((1, N, C8), lambda b, i: (b, 0, 0)),   # K  (constant over i)
                pl.BlockSpec((1, N, C), lambda b, i: (b, 0, 0)),    # V  bf16 (constant over i)
                pl.BlockSpec((C, C8), lambda b, i: (0, 0)),         # Wq^T
                pl.BlockSpec((1, C8), lambda b, i: (0, 0)),         # bq
                pl.BlockSpec(memory_space=pltpu.MemorySpace.SMEM),  # gamma scalar
            ],
            out_specs=[
                pl.BlockSpec((1, TQ, C), lambda b, i: (b, i, 0)),
                pl.BlockSpec((1, TQ, N), lambda b, i: (b, i, 0)),
            ],
        ),
        compiler_params=pltpu.CompilerParams(
            dimension_semantics=("parallel", "parallel"),
            vmem_limit_bytes=budget,
        ),
    )(x_bnc, k_bno, v_bno, wq_t, bq2, gamma1)

    # (B, N, C) -> NCHW
    out_nchw = jnp.transpose(out_bnc, (0, 2, 1)).reshape(B, C, W, H)
    return out_nchw, attn


def self_attention_ref(x_nchw, wq, bq, wk, bk, wv, bv, gamma):
    """Pure-JAX reference mirroring the PyTorch forward exactly (f32)."""
    B, C, W, H = x_nchw.shape
    N = W * H
    x = x_nchw.reshape(B, C, N)                                  # (B, C, N)
    q = jnp.einsum('oc,bcn->bon', wq, x) + bq[None, :, None]     # (B, C8, N)
    k = jnp.einsum('oc,bcn->bon', wk, x) + bk[None, :, None]
    v = jnp.einsum('oc,bcn->bon', wv, x) + bv[None, :, None]     # (B, C, N)
    attn = jnp.einsum('bcn,bcm->bnm', q, k)                      # (B, N, N) = Q^T K
    attn = jax.nn.softmax(attn, axis=-1)
    out = jnp.einsum('bcm,bnm->bcn', v, attn)                    # value @ attn^T
    out = out.reshape(B, C, W, H)
    return gamma * out + x_nchw, attn


if __name__ == "__main__":
    key = jax.random.PRNGKey(0)

    configs = [
        (2, 16, 8, 8),     # tiny: N=64, single query tile per batch
        (1, 16, 32, 32),   # N=1024: exercises query-row tiling (TQ=512 -> 2 tiles)
    ]

    for (B, C, W, H) in configs:
        k_x, k_wq, k_bq, k_wk, k_bk, k_wv, k_bv, key = jax.random.split(key, 8)
        C8 = C // 8
        N = W * H

        x = jax.random.normal(k_x, (B, C, W, H), jnp.float32)

        # Deterministic parameter init (uniform, conv-like scale).
        scale = 1.0 / jnp.sqrt(jnp.float32(C))
        wq = jax.random.uniform(k_wq, (C8, C), jnp.float32, -scale, scale)
        bq = jax.random.uniform(k_bq, (C8,), jnp.float32, -scale, scale)
        wk = jax.random.uniform(k_wk, (C8, C), jnp.float32, -scale, scale)
        bk = jax.random.uniform(k_bk, (C8,), jnp.float32, -scale, scale)
        wv = jax.random.uniform(k_wv, (C, C), jnp.float32, -scale, scale)
        bv = jax.random.uniform(k_bv, (C,), jnp.float32, -scale, scale)
        gamma = jnp.float32(1.0)          # nn.Parameter(torch.ones(1))

        out, attn = self_attention_pallas(x, wq, bq, wk, bk, wv, bv, gamma)
        out = jax.block_until_ready(out)
        attn = jax.block_until_ready(attn)

        out_ref, attn_ref = self_attention_ref(x, wq, bq, wk, bk, wv, bv, gamma)
        assert out.shape == (B, C, W, H) and attn.shape == (B, N, N)
        # attn stays on the f32 path -> tight tolerance; out goes through bf16
        # MXU operands internally -> looser tolerance.
        assert jnp.allclose(attn, attn_ref, atol=2e-3, rtol=2e-3), "attn mismatch"
        assert jnp.allclose(out, out_ref, atol=5e-2, rtol=5e-2), "out mismatch"

    print("KERNEL_OK")
</pallas_src>

<mosaic_0001>
module attributes {stable_mosaic.version = 11 : i64} {
  func.func @_self_attn_kernel(%arg0: i32, %arg1: i32, %arg2: memref<1x64x16xf32, #tpu.memory_space<vmem>>, %arg3: memref<1x64x2xf32, #tpu.memory_space<vmem>>, %arg4: memref<1x64x16xbf16, #tpu.memory_space<vmem>>, %arg5: memref<16x2xf32, #tpu.memory_space<vmem>>, %arg6: memref<1x2xf32, #tpu.memory_space<vmem>>, %arg7: memref<1xf32, #tpu.memory_space<smem>>, %arg8: memref<1x64x16xf32, #tpu.memory_space<vmem>>, %arg9: memref<1x64x64xf32, #tpu.memory_space<vmem>>) attributes {dimension_semantics = [#tpu.dimension_semantics<parallel>, #tpu.dimension_semantics<parallel>], iteration_bounds = array<i64: 2, 1>, scalar_prefetch = 0 : i64, scratch_operands = 0 : i64, tpu.core_type = #tpu.core_type<tc>, window_params = [{transform_indices = @transform_0, window_bounds = array<i64: 1, 64, 16>}, {transform_indices = @transform_1, window_bounds = array<i64: 1, 64, 2>}, {transform_indices = @transform_2, window_bounds = array<i64: 1, 64, 16>}, {pipeline_mode = #tpu.pipeline_mode<synchronous>, transform_indices = @transform_3, window_bounds = array<i64: 16, 2>}, {pipeline_mode = #tpu.pipeline_mode<synchronous>, transform_indices = @transform_4, window_bounds = array<i64: 1, 2>}, {transform_indices = @transform_5, window_bounds = array<i64: 1>}, {transform_indices = @transform_6, window_bounds = array<i64: 1, 64, 16>}, {transform_indices = @transform_7, window_bounds = array<i64: 1, 64, 64>}]} {
    %c0 = arith.constant 0 : index
    %c0_0 = arith.constant 0 : index
    %c0_1 = arith.constant 0 : index
    %0 = vector.load %arg2[%c0, %c0_0, %c0_1] : memref<1x64x16xf32, #tpu.memory_space<vmem>>, vector<1x64x16xf32>
    %1 = vector.shape_cast %0 : vector<1x64x16xf32> to vector<64x16xf32>
    %c0_2 = arith.constant 0 : index
    %c0_3 = arith.constant 0 : index
    %c0_4 = arith.constant 0 : index
    %2 = vector.load %arg3[%c0_2, %c0_3, %c0_4] : memref<1x64x2xf32, #tpu.memory_space<vmem>>, vector<1x64x2xf32>
    %3 = vector.shape_cast %2 : vector<1x64x2xf32> to vector<64x2xf32>
    %c0_5 = arith.constant 0 : index
    %c0_6 = arith.constant 0 : index
    %c0_7 = arith.constant 0 : index
    %4 = vector.load %arg4[%c0_5, %c0_6, %c0_7] : memref<1x64x16xbf16, #tpu.memory_space<vmem>>, vector<1x64x16xbf16>
    %5 = vector.shape_cast %4 : vector<1x64x16xbf16> to vector<64x16xbf16>
    %c0_8 = arith.constant 0 : index
    %c0_9 = arith.constant 0 : index
    %6 = vector.load %arg5[%c0_8, %c0_9] : memref<16x2xf32, #tpu.memory_space<vmem>>, vector<16x2xf32>
    %cst = arith.constant dense<0.000000e+00> : vector<64x2xf32>
    %7 = tpu.matmul %1, %6, %cst {dimension_numbers = #tpu.dot_dimension_numbers<[1], [0], [0], [1], [0, 0, 1, 1], [], []>} : vector<64x16xf32>, vector<16x2xf32>, vector<64x2xf32> -> vector<64x2xf32>
    %c0_10 = arith.constant 0 : index
    %c0_11 = arith.constant 0 : index
    %8 = vector.load %arg6[%c0_10, %c0_11] : memref<1x2xf32, #tpu.memory_space<vmem>>, vector<1x2xf32>
    %9 = vector.broadcast %8 : vector<1x2xf32> to vector<64x2xf32>
    %10 = arith.addf %7, %9 : vector<64x2xf32>
    %cst_12 = arith.constant dense<0.000000e+00> : vector<64x64xf32>
    %11 = tpu.matmul %10, %3, %cst_12 {dimension_numbers = #tpu.dot_dimension_numbers<[1], [1], [0], [0], [0, 0, 1, 0], [], []>} : vector<64x2xf32>, vector<64x2xf32>, vector<64x64xf32> -> vector<64x64xf32>
    %cst_13 = arith.constant dense<0xFF800000> : vector<64xf32>
    %12 = vector.multi_reduction <maximumf>, %11, %cst_13 [1] : vector<64x64xf32> to vector<64xf32>
    %13 = vector.shape_cast %12 : vector<64xf32> to vector<64x1xf32>
    %14 = vector.broadcast %13 : vector<64x1xf32> to vector<64x64xf32>
    %15 = arith.subf %11, %14 : vector<64x64xf32>
    %16 = math.exp %15 : vector<64x64xf32>
    %c0_14 = arith.constant 0 : index
    %c0_15 = arith.constant 0 : index
    %c0_16 = arith.constant 0 : index
    %17 = vector.load %arg9[%c0_14, %c0_15, %c0_16] : memref<1x64x64xf32, #tpu.memory_space<vmem>>, vector<1x64x64xf32>
    %18 = vector.shape_cast %17 : vector<1x64x64xf32> to vector<64x64xf32>
    %19 = vector.shape_cast %16 : vector<64x64xf32> to vector<1x64x64xf32>
    tpu.vector_store %arg9[%c0_14, %c0_15, %c0_16], %19 {strides = array<i32>} : memref<1x64x64xf32, #tpu.memory_space<vmem>>, vector<1x64x64xf32>,
    %cst_17 = arith.constant dense<0.000000e+00> : vector<64xf32>
    %20 = vector.multi_reduction <add>, %16, %cst_17 [1] : vector<64x64xf32> to vector<64xf32>
    %21 = vector.shape_cast %20 : vector<64xf32> to vector<64x1xf32>
    %22 = tpu.reciprocal %21 : vector<64x1xf32> -> vector<64x1xf32>
    %c0_18 = arith.constant 0 : index
    %c0_19 = arith.constant 0 : index
    %c0_20 = arith.constant 0 : index
    %23 = vector.load %arg9[%c0_18, %c0_19, %c0_20] : memref<1x64x64xf32, #tpu.memory_space<vmem>>, vector<1x64x64xf32>
    %24 = vector.shape_cast %23 : vector<1x64x64xf32> to vector<64x64xf32>
    %25 = vector.broadcast %22 : vector<64x1xf32> to vector<64x64xf32>
    %26 = arith.mulf %24, %25 : vector<64x64xf32>
    %c0_21 = arith.constant 0 : index
    %c0_22 = arith.constant 0 : index
    %c0_23 = arith.constant 0 : index
    %27 = vector.load %arg9[%c0_21, %c0_22, %c0_23] : memref<1x64x64xf32, #tpu.memory_space<vmem>>, vector<1x64x64xf32>
    %28 = vector.shape_cast %27 : vector<1x64x64xf32> to vector<64x64xf32>
    %29 = vector.shape_cast %26 : vector<64x64xf32> to vector<1x64x64xf32>
    tpu.vector_store %arg9[%c0_21, %c0_22, %c0_23], %29 {strides = array<i32>} : memref<1x64x64xf32, #tpu.memory_space<vmem>>, vector<1x64x64xf32>,
    %c0_24 = arith.constant 0 : index
    %c0_25 = arith.constant 0 : index
    %c0_26 = arith.constant 0 : index
    %30 = vector.load %arg9[%c0_24, %c0_25, %c0_26] : memref<1x64x64xf32, #tpu.memory_space<vmem>>, vector<1x64x64xf32>
    %31 = vector.shape_cast %30 : vector<1x64x64xf32> to vector<64x64xf32>
    %32 = arith.truncf %31 : vector<64x64xf32> to vector<64x64xbf16>
    %cst_27 = arith.constant dense<0.000000e+00> : vector<64x16xf32>
    %33 = tpu.matmul %32, %5, %cst_27 {dimension_numbers = #tpu.dot_dimension_numbers<[1], [0], [0], [1], [0, 0, 1, 1], [], []>} : vector<64x64xbf16>, vector<64x16xbf16>, vector<64x16xf32> -> vector<64x16xf32>
    %c0_28 = arith.constant 0 : index
    %34 = memref.load %arg7[%c0_28] : memref<1xf32, #tpu.memory_space<smem>>
    %35 = vector.broadcast %34 : f32 to vector<64x16xf32>
    %36 = arith.mulf %35, %33 : vector<64x16xf32>
    %37 = arith.addf %36, %1 : vector<64x16xf32>
    %c0_29 = arith.constant 0 : index
    %c0_30 = arith.constant 0 : index
    %c0_31 = arith.constant 0 : index
    %38 = vector.load %arg8[%c0_29, %c0_30, %c0_31] : memref<1x64x16xf32, #tpu.memory_space<vmem>>, vector<1x64x16xf32>
    %39 = vector.shape_cast %38 : vector<1x64x16xf32> to vector<64x16xf32>
    %40 = vector.shape_cast %37 : vector<64x16xf32> to vector<1x64x16xf32>
    tpu.vector_store %arg8[%c0_29, %c0_30, %c0_31], %40 {strides = array<i32>} : memref<1x64x16xf32, #tpu.memory_space<vmem>>, vector<1x64x16xf32>,
    return
  }
  func.func @transform_0(%arg0: i32, %arg1: i32) -> (i32, i32, i32) {
    %c0_i32 = arith.constant 0 : i32
    %c0_i32_0 = arith.constant 0 : i32
    return %arg0, %arg1, %c0_i32 : i32, i32, i32
  }
  func.func @transform_1(%arg0: i32, %arg1: i32) -> (i32, i32, i32) {
    %c0_i32 = arith.constant 0 : i32
    %c0_i32_0 = arith.constant 0 : i32
    %c0_i32_1 = arith.constant 0 : i32
    return %arg0, %c0_i32, %c0_i32_0 : i32, i32, i32
  }
  func.func @transform_2(%arg0: i32, %arg1: i32) -> (i32, i32, i32) {
    %c0_i32 = arith.constant 0 : i32
    %c0_i32_0 = arith.constant 0 : i32
    %c0_i32_1 = arith.constant 0 : i32
    return %arg0, %c0_i32, %c0_i32_0 : i32, i32, i32
  }
  func.func @transform_3(%arg0: i32, %arg1: i32) -> (i32, i32) {
    %c0_i32 = arith.constant 0 : i32
    %c0_i32_0 = arith.constant 0 : i32
    %c0_i32_1 = arith.constant 0 : i32
    return %c0_i32, %c0_i32_0 : i32, i32
  }
  func.func @transform_4(%arg0: i32, %arg1: i32) -> (i32, i32) {
    %c0_i32 = arith.constant 0 : i32
    %c0_i32_0 = arith.constant 0 : i32
    %c0_i32_1 = arith.constant 0 : i32
    return %c0_i32, %c0_i32_0 : i32, i32
  }
  func.func @transform_5(%arg0: i32, %arg1: i32) -> i32 {
    %c0_i32 = arith.constant 0 : i32
    %c0_i32_0 = arith.constant 0 : i32
    return %c0_i32 : i32
  }
  func.func @transform_6(%arg0: i32, %arg1: i32) -> (i32, i32, i32) {
    %c0_i32 = arith.constant 0 : i32
    %c0_i32_0 = arith.constant 0 : i32
    return %arg0, %arg1, %c0_i32 : i32, i32, i32
  }
  func.func @transform_7(%arg0: i32, %arg1: i32) -> (i32, i32, i32) {
    %c0_i32 = arith.constant 0 : i32
    %c0_i32_0 = arith.constant 0 : i32
    return %arg0, %arg1, %c0_i32 : i32, i32, i32
  }
}

</mosaic_0001>

<llo_original>
// kernel: tpu_custom_call.1
$region0: #{tpu_custom_call.1}
  #allocation0 [shape = 'u32[]', space=smem, size = 0x4, offset = 0x4, fixed_abs, tag = 'smem constant byte address 0x4 - core index']
  #allocation1 [shape = 'u32[72,128]{1,0:T(1,128)}', space=vmem, size = 0x9000, scoped, tag = 'internal scratch']
  #allocation2 [shape = 'f32[1]{0:T(128)S(6)}', space=smem, size = 0x200, scoped, tag = 'scoped memory for tpu_custom_call.1']
  %s0 = inlined_call_operand.vmem [shape: f32[2,64,16], index: 0, kind: input, shape index: {}]
  %s1 = inlined_call_operand.vmem [shape: f32[2,64,2], index: 1, kind: input, shape index: {}]
  %s2 = inlined_call_operand.vmem [shape: bf16[2,64,16], index: 2, kind: input, shape index: {}]
  %s3 = inlined_call_operand.vmem [shape: f32[16,2], index: 3, kind: input, shape index: {}]
  %s4 = inlined_call_operand.vmem [shape: f32[1,2], index: 4, kind: input, shape index: {}]
  %s5 = inlined_call_operand.<no memory space> [shape: f32[1], index: 5, kind: input, shape index: {}]
  %s6 = inlined_call_operand.vmem [shape: f32[2,64,16], index: 6, kind: output, shape index: {0}]
  %s7 = inlined_call_operand.hbm [shape: f32[2,64,64], index: 7, kind: output, shape index: {1}]
  %8 = xla_tuple %s6, %s7
  %s9 = sld [smem:[#allocation0]]
  $region65: #{tpu_custom_call.1} parent=0
    _
  %s11 = ssub.s32 1, %s9
  %s12 = scalar_select 0, %s11, %s9
  %13 = sst [smem:[#allocation2]] %s5
  $region1: #{tpu_custom_call.1} parent=0
    #allocation3 [shape = 'u8[65536]{0}', space=vmem, size = 0x10000, scoped, tag = 'output window, operand 1']
    #allocation4 [shape = 's32[2]{0}', space=sflag, size = 0x8, scoped, tag = 'scoped memory for tpu_custom_call.1']
    %14 = vsyncpa [#allocation4], 0
    %s15 = scalar_lea.sflag [#allocation4], 1
    %16 = vsyncpa %s15, 0
    loop: start=0, step=1, limit=4
    $region2: #{tpu_custom_call.1} parent=1 // loop_pre_header
      _
    $region3: #{tpu_custom_call.1} parent=1 // loop_header
      %s18 = sphi 0, %s22
      %p19 = scmp.ge.s32.totalorder %s18, 4
      %s25 = sphi 0, %s37
      %s26 = sphi 0, %s33
      %s27 = sphi 0, %s25
      %s28 = sphi 0, %s26
      %s29 = sphi 0, %s27
      %s30 = sphi 0, %s28
      %s42 = sphi 0, %s44
      %s45 = sphi 0, %s42
      %s46 = sphi 0, %s45
      %s62 = sphi 0, %s46
      %s68 = sphi 0, %s70
      %s71 = sphi 0, %s68
      %s72 = sphi 0, %s71
      %s88 = sphi 0, %s72
      %s94 = sphi 0, %s96
      %s97 = sphi 0, %s94
      %s98 = sphi 0, %s97
      %s114 = sphi 0, %s98
      %s118 = sphi 0, %s118
      %s120 = sphi 0, %s118
      %s121 = sphi 0, %s120
      %s135 = sphi 0, %s121
      %s139 = sphi 0, %s139
      %s141 = sphi 0, %s139
      %s142 = sphi 0, %s141
      %s156 = sphi 0, %s142
      %s160 = sphi 0, %s160
      %s162 = sphi 0, %s160
      %s163 = sphi 0, %s162
      %s177 = sphi 0, %s163
      %s185 = sphi 0, %s187
      %s188 = sphi 0, %s185
      %s189 = sphi 0, %s188
      %s205 = sphi 0, %s189
      %s213 = sphi 0, %s215
      %s216 = sphi 0, %s213
      %s217 = sphi 0, %s216
      %s233 = sphi 0, %s217
    $region4: #{tpu_custom_call.1} parent=1 // loop_header_branch
      %21 = sbr.rel (%p19) target = $region8
    $region5: #{tpu_custom_call.1} parent=1 // loop_body
      %s23 = ssub.s32 %s18, 1
      %s24 = ssub.s32 %s18, 2
      %s31 = sadd.s32 1, %s26
      %p32 = scmp.ge.s32.totalorder %s31, 1
      %s33 = scalar_select %p32, 0, %s31
      %s34 = sadd.s32 1, %s25
      %s35 = scalar_select %p32, %s34, %s25
      %p36 = scmp.ge.s32.totalorder %s35, 2
      %s37 = scalar_select %p36, 0, %s35
      %s38 = ssub.s32 %s25, %s37
      %s39 = ssub.s32 %s26, %s33
      %s40 = sor.u32 %s38, %s39
      %p41 = scmp.eq.s32.totalorder %s40, 0
      %s43 = sadd.s32 %s42, 1
      %s44 = scalar_select %p41, %s42, %s43
      %p47 = pneg %p41
      %p48 = scmp.eq.s32.totalorder %s18, 1
      %p49 = por %p47, %p48
      %p50 = scmp.ne.s32.totalorder %s42, %s45
      %p51 = scmp.eq.s32.totalorder %s18, 0
      %p52 = por %p50, %p51
      %p53 = scmp.ne.s32.totalorder %s42, %s45
      %p54 = scmp.eq.s32.totalorder %s23, 1
      %p55 = por %p53, %p54
      %p56 = scmp.ne.s32.totalorder %s45, %s46
      %p57 = scmp.eq.s32.totalorder %s23, 0
      %p58 = por %p56, %p57
      %p59 = scmp.ne.s32.totalorder %s45, %s46
      %p60 = scmp.eq.s32.totalorder %s24, 1
      %p61 = por %p59, %p60
      %p63 = scmp.ne.s32.totalorder %s46, %s62
      %p64 = scmp.eq.s32.totalorder %s24, 0
      %p65 = por %p63, %p64
      %s66 = ssub.s32 %s25, %s37
      %p67 = scmp.eq.s32.totalorder %s66, 0
      %s69 = sadd.s32 %s68, 1
      %s70 = scalar_select %p67, %s68, %s69
      %p73 = pneg %p67
      %p74 = scmp.eq.s32.totalorder %s18, 1
      %p75 = por %p73, %p74
      %p76 = scmp.ne.s32.totalorder %s68, %s71
      %p77 = scmp.eq.s32.totalorder %s18, 0
      %p78 = por %p76, %p77
      %p79 = scmp.ne.s32.totalorder %s68, %s71
      %p80 = scmp.eq.s32.totalorder %s23, 1
      %p81 = por %p79, %p80
      %p82 = scmp.ne.s32.totalorder %s71, %s72
      %p83 = scmp.eq.s32.totalorder %s23, 0
      %p84 = por %p82, %p83
      %p85 = scmp.ne.s32.totalorder %s71, %s72
      %p86 = scmp.eq.s32.totalorder %s24, 1
      %p87 = por %p85, %p86
      %p89 = scmp.ne.s32.totalorder %s72, %s88
      %p90 = scmp.eq.s32.totalorder %s24, 0
      %p91 = por %p89, %p90
      %s92 = ssub.s32 %s25, %s37
      %p93 = scmp.eq.s32.totalorder %s92, 0
      %s95 = sadd.s32 %s94, 1
      %s96 = scalar_select %p93, %s94, %s95
      %p99 = pneg %p93
      %p100 = scmp.eq.s32.totalorder %s18, 1
      %p101 = por %p99, %p100
      %p102 = scmp.ne.s32.totalorder %s94, %s97
      %p103 = scmp.eq.s32.totalorder %s18, 0
      %p104 = por %p102, %p103
      %p105 = scmp.ne.s32.totalorder %s94, %s97
      %p106 = scmp.eq.s32.totalorder %s23, 1
      %p107 = por %p105, %p106
      %p108 = scmp.ne.s32.totalorder %s97, %s98
      %p109 = scmp.eq.s32.totalorder %s23, 0
      %p110 = por %p108, %p109
      %p111 = scmp.ne.s32.totalorder %s97, %s98
      %p112 = scmp.eq.s32.totalorder %s24, 1
      %p113 = por %p111, %p112
      %p115 = scmp.ne.s32.totalorder %s98, %s114
      %p116 = scmp.eq.s32.totalorder %s24, 0
      %p117 = por %p115, %p116
      %s119 = sadd.s32 %s118, 1
      %p122 = scmp.eq.s32.totalorder %s18, 1
      %p123 = scmp.ne.s32.totalorder %s118, %s120
      %p124 = scmp.eq.s32.totalorder %s18, 0
      %p125 = por %p123, %p124
      %p126 = scmp.ne.s32.totalorder %s118, %s120
      %p127 = scmp.eq.s32.totalorder %s23, 1
      %p128 = por %p126, %p127
      %p129 = scmp.ne.s32.totalorder %s120, %s121
      %p130 = scmp.eq.s32.totalorder %s23, 0
      %p131 = por %p129, %p130
      %p132 = scmp.ne.s32.totalorder %s120, %s121
      %p133 = scmp.eq.s32.totalorder %s24, 1
      %p134 = por %p132, %p133
      %p136 = scmp.ne.s32.totalorder %s121, %s135
      %p137 = scmp.eq.s32.totalorder %s24, 0
      %p138 = por %p136, %p137
      %s140 = sadd.s32 %s139, 1
      %p143 = scmp.eq.s32.totalorder %s18, 1
      %p144 = scmp.ne.s32.totalorder %s139, %s141
      %p145 = scmp.eq.s32.totalorder %s18, 0
      %p146 = por %p144, %p145
      %p147 = scmp.ne.s32.totalorder %s139, %s141
      %p148 = scmp.eq.s32.totalorder %s23, 1
      %p149 = por %p147, %p148
      %p150 = scmp.ne.s32.totalorder %s141, %s142
      %p151 = scmp.eq.s32.totalorder %s23, 0
      %p152 = por %p150, %p151
      %p153 = scmp.ne.s32.totalorder %s141, %s142
      %p154 = scmp.eq.s32.totalorder %s24, 1
      %p155 = por %p153, %p154
      %p157 = scmp.ne.s32.totalorder %s142, %s156
      %p158 = scmp.eq.s32.totalorder %s24, 0
      %p159 = por %p157, %p158
      %s161 = sadd.s32 %s160, 1
      %p164 = scmp.eq.s32.totalorder %s18, 1
      %p165 = scmp.ne.s32.totalorder %s160, %s162
      %p166 = scmp.eq.s32.totalorder %s18, 0
      %p167 = por %p165, %p166
      %p168 = scmp.ne.s32.totalorder %s160, %s162
      %p169 = scmp.eq.s32.totalorder %s23, 1
      %p170 = por %p168, %p169
      %p171 = scmp.ne.s32.totalorder %s162, %s163
      %p172 = scmp.eq.s32.totalorder %s23, 0
      %p173 = por %p171, %p172
      %p174 = scmp.ne.s32.totalorder %s162, %s163
      %p175 = scmp.eq.s32.totalorder %s24, 1
      %p176 = por %p174, %p175
      %p178 = scmp.ne.s32.totalorder %s163, %s177
      %p179 = scmp.eq.s32.totalorder %s24, 0
      %p180 = por %p178, %p179
      %s181 = ssub.s32 %s25, %s37
      %s182 = ssub.s32 %s26, %s33
      %s183 = sor.u32 %s181, %s182
      %p184 = scmp.eq.s32.totalorder %s183, 0
      %s186 = sadd.s32 %s185, 1
      %s187 = scalar_select %p184, %s185, %s186
      %p190 = pneg %p184
      %p191 = scmp.eq.s32.totalorder %s18, 1
      %p192 = por %p190, %p191
      %p193 = scmp.ne.s32.totalorder %s185, %s188
      %p194 = scmp.eq.s32.totalorder %s18, 0
      %p195 = por %p193, %p194
      %p196 = scmp.ne.s32.totalorder %s185, %s188
      %p197 = scmp.eq.s32.totalorder %s23, 1
      %p198 = por %p196, %p197
      %p199 = scmp.ne.s32.totalorder %s188, %s189
      %p200 = scmp.eq.s32.totalorder %s23, 0
      %p201 = por %p199, %p200
      %p202 = scmp.ne.s32.totalorder %s188, %s189
      %p203 = scmp.eq.s32.totalorder %s24, 1
      %p204 = por %p202, %p203
      %p206 = scmp.ne.s32.totalorder %s189, %s205
      %p207 = scmp.eq.s32.totalorder %s24, 0
      %p208 = por %p206, %p207
      %s209 = ssub.s32 %s25, %s37
      %s210 = ssub.s32 %s26, %s33
      %s211 = sor.u32 %s209, %s210
      %p212 = scmp.eq.s32.totalorder %s211, 0
      %s214 = sadd.s32 %s213, 1
      %s215 = scalar_select %p212, %s213, %s214
      %p218 = pneg %p212
      %p219 = scmp.eq.s32.totalorder %s18, 1
      %p220 = por %p218, %p219
      %p221 = scmp.ne.s32.totalorder %s213, %s216
      %p222 = scmp.eq.s32.totalorder %s18, 0
      %p223 = por %p221, %p222
      %p224 = scmp.ne.s32.totalorder %s213, %s216
      %p225 = scmp.eq.s32.totalorder %s23, 1
      %p226 = por %p224, %p225
      %p227 = scmp.ne.s32.totalorder %s216, %s217
      %p228 = scmp.eq.s32.totalorder %s23, 0
      %p229 = por %p227, %p228
      %p230 = scmp.ne.s32.totalorder %s216, %s217
      %p231 = scmp.eq.s32.totalorder %s24, 1
      %p232 = por %p230, %p231
      %p234 = scmp.ne.s32.totalorder %s217, %s233
      %p235 = scmp.eq.s32.totalorder %s24, 0
      %p236 = por %p234, %p235
      %p237 = scmp.le.s32.totalorder 1, %s18
      %p238 = scmp.lt.s32.totalorder %s18, 3
      %p239 = pnand %p237, %p238
      %p240 = pneg %p239
      // Predicated region
      $region9: #{tpu_custom_call.1} parent=5 // pred_check
        _
      $region10: #{tpu_custom_call.1} parent=5 // pred_check_branch
        %242 = sbr.rel (%p239) target = $region12
      $region11: #{tpu_custom_call.1} parent=5 // pred_region
        %s243 = ssub.s32 %s18, 1
        // Predicated region
        $region13: #{tpu_custom_call.1} parent=11 // pred_check
          %p244 = pneg %p131
        $region14: #{tpu_custom_call.1} parent=11 // pred_check_branch
          %246 = sbr.rel (%p244) target = $region16
        $region15: #{tpu_custom_call.1} parent=11 // pred_region
          _
        $region16: #{tpu_custom_call.1} parent=11 // pred_fallthru
          _
        // Predicated region
        $region17: #{tpu_custom_call.1} parent=11 // pred_check
          %p247 = pneg %p152
        $region18: #{tpu_custom_call.1} parent=11 // pred_check_branch
          %249 = sbr.rel (%p247) target = $region20
        $region19: #{tpu_custom_call.1} parent=11 // pred_region
          _
        $region20: #{tpu_custom_call.1} parent=11 // pred_fallthru
          _
        // Predicated region
        $region21: #{tpu_custom_call.1} parent=11 // pred_check
          %p250 = pneg %p173
        $region22: #{tpu_custom_call.1} parent=11 // pred_check_branch
          %252 = sbr.rel (%p250) target = $region24
        $region23: #{tpu_custom_call.1} parent=11 // pred_region
          _
        $region24: #{tpu_custom_call.1} parent=11 // pred_fallthru
          _
      $region12: #{tpu_custom_call.1} parent=5 // pred_fallthru
        _
      %p253 = scmp.lt.s32.totalorder %s18, 2
      // Predicated region
      $region25: #{tpu_custom_call.1} parent=5 // pred_check
        %p254 = pneg %p253
      $region26: #{tpu_custom_call.1} parent=5 // pred_check_branch
        %256 = sbr.rel (%p254) target = $region28
      $region27: #{tpu_custom_call.1} parent=5 // pred_region
        // Predicated region
        $region29: #{tpu_custom_call.1} parent=27 // pred_check
          %p257 = pneg %p52
        $region30: #{tpu_custom_call.1} parent=27 // pred_check_branch
          %259 = sbr.rel (%p257) target = $region32
        $region31: #{tpu_custom_call.1} parent=27 // pred_region
          %s260 = smul.u32 8, %s26
          %p261 = scmp.lt.s32.totalorder %s25, 1
          %s262 = scalar_select %p261, %s25, 1
          %p263 = scmp.lt.s32.totalorder %s260, 7
          %s264 = scalar_select %p263, %s260, 7
          %s265 = smul.addr %s262, 8
          %s266 = sadd.s32 %s264, %s265
          %s267 = smul.addr %s266, 8
          %s268 = scalar_lea.vmem %s0, %s267
          %s269 = smul.u32 8, %s26
        $region32: #{tpu_custom_call.1} parent=27 // pred_fallthru
          _
        // Predicated region
        $region33: #{tpu_custom_call.1} parent=27 // pred_check
          %p270 = pneg %p78
        $region34: #{tpu_custom_call.1} parent=27 // pred_check_branch
          %272 = sbr.rel (%p270) target = $region36
        $region35: #{tpu_custom_call.1} parent=27 // pred_region
          %p273 = scmp.lt.s32.totalorder %s25, 1
          %s274 = scalar_select %p273, %s25, 1
          %s275 = smul.addr %s274, 8
          %s276 = smul.addr %s275, 8
          %s277 = scalar_lea.vmem %s1, %s276
        $region36: #{tpu_custom_call.1} parent=27 // pred_fallthru
          _
        // Predicated region
        $region37: #{tpu_custom_call.1} parent=27 // pred_check
          %p278 = pneg %p104
        $region38: #{tpu_custom_call.1} parent=27 // pred_check_branch
          %280 = sbr.rel (%p278) target = $region40
        $region39: #{tpu_custom_call.1} parent=27 // pred_region
          %p281 = scmp.lt.s32.totalorder %s25, 1
          %s282 = scalar_select %p281, %s25, 1
          %s283 = smul.addr %s282, 8
          %s284 = smul.addr %s283, 4
          %s285 = scalar_lea.vmem %s2, %s284
        $region40: #{tpu_custom_call.1} parent=27 // pred_fallthru
          _
      $region28: #{tpu_custom_call.1} parent=5 // pred_fallthru
        _
      %p286 = scmp.le.s32.totalorder 1, %s18
      %p287 = scmp.lt.s32.totalorder %s18, 3
      %p288 = pnand %p286, %p287
      %p289 = pneg %p288
      // Predicated region
      $region41: #{tpu_custom_call.1} parent=5 // pred_check
        _
      $region42: #{tpu_custom_call.1} parent=5 // pred_check_branch
        %291 = sbr.rel (%p288) target = $region44
      $region43: #{tpu_custom_call.1} parent=5 // pred_region
        %s292 = ssub.s32 %s18, 1
        %s293 = smul.u32 8, %s28
        %p294 = scmp.lt.s32.totalorder %s27, 1
        %s295 = scalar_select %p294, %s27, 1
        %p296 = scmp.lt.s32.totalorder %s293, 7
        %s297 = scalar_select %p296, %s293, 7
        %s298 = smul.addr %s295, 8
        %s299 = sadd.s32 %s297, %s298
        %s300 = smul.addr %s299, 8
        %s301 = scalar_lea.vmem %s0, %s300
        %p302 = pneg %p58
        %p303 = pneg %p55
        %p304 = scmp.lt.s32.totalorder %s27, 1
        %s305 = scalar_select %p304, %s27, 1
        %s306 = smul.addr %s305, 8
        %s307 = smul.addr %s306, 8
        %s308 = scalar_lea.vmem %s1, %s307
        %p309 = pneg %p84
        %p310 = pneg %p81
        %p311 = scmp.lt.s32.totalorder %s27, 1
        %s312 = scalar_select %p311, %s27, 1
        %s313 = smul.addr %s312, 8
        %s314 = smul.addr %s313, 4
        %s315 = scalar_lea.vmem %s2, %s314
        %p316 = pneg %p110
        %p317 = pneg %p107
        %p318 = pneg %p131
        %p319 = pneg %p128
        %p320 = pneg %p152
        %p321 = pneg %p149
        %p322 = pneg %p173
        %p323 = pneg %p170
        %p324 = pneg %p201
        %p325 = pneg %p198
        %s326 = smul.u32 8, %s28
        %p327 = scmp.lt.s32.totalorder %s27, 1
        %s328 = scalar_select %p327, %s27, 1
        %p329 = scmp.lt.s32.totalorder %s326, 7
        %s330 = scalar_select %p329, %s326, 7
        %s331 = smul.addr %s328, 8
        %s332 = sadd.s32 %s330, %s331
        %s333 = smul.addr %s332, 8
        %s334 = scalar_lea.vmem %s6, %s333
        %p335 = pneg %p229
        %p336 = pneg %p226
        %s337 = sand.u32 %s216, 1
        %s338 = scalar_lea.sflag [#allocation4], %s337
        %s339 = sand.u32 %s216, 1
        %s340 = smul.addr %s339, 64
        %s341 = scalar_lea.vmem [#allocation3], %s340
        %s342 = smul.u32 8, %s28
        %p343 = scmp.lt.s32.totalorder %s27, 1
        %s344 = scalar_select %p343, %s27, 1
        %p345 = scmp.lt.s32.totalorder %s342, 7
        %s346 = scalar_select %p345, %s342, 7
        %s347 = smul.addr %s344, 8
        %s348 = sadd.s32 %s346, %s347
        %s349 = smul.addr %s348, 8
        %s350 = scalar_lea.vmem %s0, %s349
        %s351 = smul.u32 8, %s28
        %p352 = scmp.lt.s32.totalorder %s27, 1
        %s353 = scalar_select %p352, %s27, 1
        %s354 = smul.addr %s353, 8
        %s355 = smul.addr %s354, 8
        %s356 = scalar_lea.vmem %s1, %s355
        %p357 = scmp.lt.s32.totalorder %s27, 1
        %s358 = scalar_select %p357, %s27, 1
        %s359 = smul.addr %s358, 8
        %s360 = smul.addr %s359, 4
        %s361 = scalar_lea.vmem %s2, %s360
        %s362 = smul.u32 8, %s28
        %p363 = scmp.lt.s32.totalorder %s27, 1
        %s364 = scalar_select %p363, %s27, 1
        %p365 = scmp.lt.s32.totalorder %s362, 7
        %s366 = scalar_select %p365, %s362, 7
        %s367 = smul.addr %s364, 8
        %s368 = sadd.s32 %s366, %s367
        %s369 = smul.addr %s368, 8
        %s370 = scalar_lea.vmem %s6, %s369
        %s371 = smul.u32 8, %s28
        %s372 = smul.u32 8, %s28
        %v374 = vld [vmem:[%s350] sm:$0xff]
        %v375 = vld [vmem:[%s350 + $0x8] sm:$0xff]
        %v376 = vld [vmem:[%s350 + $0x10] sm:$0xff]
        %v377 = vld [vmem:[%s350 + $0x18] sm:$0xff]
        %v378 = vld [vmem:[%s350 + $0x20] sm:$0xff]
        %v379 = vld [vmem:[%s350 + $0x28] sm:$0xff]
        %v380 = vld [vmem:[%s350 + $0x30] sm:$0xff]
        %v381 = vld [vmem:[%s350 + $0x38] sm:$0xff]
        %v382 = vld [vmem:[%s356] sm:$0xff]
        %v383 = vld [vmem:[%s356 + $0x8] sm:$0xff]
        %v384 = vld [vmem:[%s356 + $0x10] sm:$0xff]
        %v385 = vld [vmem:[%s356 + $0x18] sm:$0xff]
        %v386 = vld [vmem:[%s356 + $0x20] sm:$0xff]
        %v387 = vld [vmem:[%s356 + $0x28] sm:$0xff]
        %v388 = vld [vmem:[%s356 + $0x30] sm:$0xff]
        %v389 = vld [vmem:[%s356 + $0x38] sm:$0xff]
        %v390 = vld [vmem:[%s361] sm:$0xf]
        %v391 = vld [vmem:[%s361 + $0x4] sm:$0xf]
        %v392 = vld [vmem:[%s361 + $0x8] sm:$0xf]
        %v393 = vld [vmem:[%s361 + $0xc] sm:$0xf]
        %v394 = vld [vmem:[%s361 + $0x10] sm:$0xf]
        %v395 = vld [vmem:[%s361 + $0x14] sm:$0xf]
        %v396 = vld [vmem:[%s361 + $0x18] sm:$0xf]
        %v397 = vld [vmem:[%s361 + $0x1c] sm:$0xf]
        %v398 = vld [vmem:[%s3] sm:$0xff]
        %v399 = vld [vmem:[%s3 + $0x8] sm:$0xff]
        %v400 = vld [vmem:[%s4] sm:$0x1]
        %v402 = vperm.slane %v400, 0
        %vm404 = vcmask 130048
        %v406 = vsel %vm404, %v374, 0
        %v409 = vsel %vm404, %v375, 0
        %v412 = vsel %vm404, %v376, 0
        %v415 = vsel %vm404, %v377, 0
        %v418 = vsel %vm404, %v378, 0
        %v421 = vsel %vm404, %v379, 0
        %v424 = vsel %vm404, %v380, 0
        %v427 = vsel %vm404, %v381, 0
        %429 = vmatpush.msra.mxu0 0.0
        %430 = vmatpush.msra.mxu0 0.0
        %431 = vmatpush.msra.mxu0 0.0
        %432 = vmatpush.msra.mxu0 0.0
        %433 = vmatpush.msra.mxu0 0.0
        %434 = vmatpush.msra.mxu0 0.0
        %435 = vmatpush.msra.mxu0 0.0
        %436 = vmatpush.msra.mxu0 0.0
        %437 = vmatpush.msra.mxu0 0.0
        %438 = vmatpush.msra.mxu0 0.0
        %439 = vmatpush.msra.mxu0 0.0
        %440 = vmatpush.msra.mxu0 0.0
        %441 = vmatpush.msra.mxu0 0.0
        %442 = vmatpush.msra.mxu0 0.0
        %443 = vmatpush.msra.mxu0 %v399
        %444 = vmatpush.msra.mxu0 %v398
        %445 = vmatmul.f32.gmra.mxu0 %v406
        %v446 = vpop.f32.mrf.mxu0
        %v447 = vadd.f32 %v402, %v446
        %448 = vmatmul.f32.gmra.mxu0 %v409
        %v449 = vpop.f32.mrf.mxu0
        %v450 = vadd.f32 %v402, %v449
        %451 = vmatmul.f32.gmra.mxu0 %v412
        %v452 = vpop.f32.mrf.mxu0
        %v453 = vadd.f32 %v402, %v452
        %454 = vmatmul.f32.gmra.mxu0 %v415
        %v455 = vpop.f32.mrf.mxu0
        %v456 = vadd.f32 %v402, %v455
        %457 = vmatmul.f32.gmra.mxu0 %v418
        %v458 = vpop.f32.mrf.mxu0
        %v459 = vadd.f32 %v402, %v458
        %460 = vmatmul.f32.gmra.mxu0 %v421
        %v461 = vpop.f32.mrf.mxu0
        %v462 = vadd.f32 %v402, %v461
        %463 = vmatmul.f32.gmra.mxu0 %v424
        %v464 = vpop.f32.mrf.mxu0
        %v465 = vadd.f32 %v402, %v464
        %466 = vmatmul.f32.gmra.mxu0 %v427
        %v467 = vpop.f32.mrf.mxu0
        %v468 = vadd.f32 %v402, %v467
        %469 = vdwg.mxu0
        %vm470 = vcmask 15360
        %v472 = vsel %vm470, %v447, 0
        %v475 = vsel %vm470, %v450, 0
        %v478 = vsel %vm470, %v453, 0
        %v481 = vsel %vm470, %v456, 0
        %v484 = vsel %vm470, %v459, 0
        %v487 = vsel %vm470, %v462, 0
        %v490 = vsel %vm470, %v465, 0
        %v493 = vsel %vm470, %v468, 0
        %v496 = vsel %vm470, %v382, 0
        %v499 = vsel %vm470, %v383, 0
        %v502 = vsel %vm470, %v384, 0
        %v505 = vsel %vm470, %v385, 0
        %v508 = vsel %vm470, %v386, 0
        %v511 = vsel %vm470, %v387, 0
        %v514 = vsel %vm470, %v388, 0
        %v517 = vsel %vm470, %v389, 0
        %519 = vmatpush.xpose.msra.mxu0 0.0
        %520 = vmatpush.xpose.msra.mxu0 0.0
        %521 = vmatpush.xpose.msra.mxu0 0.0
        %522 = vmatpush.xpose.msra.mxu0 0.0
        %523 = vmatpush.xpose.msra.mxu0 0.0
        %524 = vmatpush.xpose.msra.mxu0 0.0
        %525 = vmatpush.xpose.msra.mxu0 0.0
        %526 = vmatpush.xpose.msra.mxu0 0.0
        %527 = vmatpush.xpose.msra.mxu0 %v517
        %528 = vmatpush.xpose.msra.mxu0 %v514
        %529 = vmatpush.xpose.msra.mxu0 %v511
        %530 = vmatpush.xpose.msra.mxu0 %v508
        %531 = vmatpush.xpose.msra.mxu0 %v505
        %532 = vmatpush.xpose.msra.mxu0 %v502
        %533 = vmatpush.xpose.msra.mxu0 %v499
        %534 = vmatpush.xpose.msra.mxu0 %v496
        %535 = vmatmul.f32.gmra.mxu0 %v472
        %v536 = vpop.f32.mrf.mxu0
        %v537 = vadd.f32 0.0, %v536
        %538 = vmatmul.f32.gmra.mxu0 %v475
        %v539 = vpop.f32.mrf.mxu0
        %v540 = vadd.f32 0.0, %v539
        %541 = vmatmul.f32.gmra.mxu0 %v478
        %v542 = vpop.f32.mrf.mxu0
        %v543 = vadd.f32 0.0, %v542
        %544 = vmatmul.f32.gmra.mxu0 %v481
        %v545 = vpop.f32.mrf.mxu0
        %v546 = vadd.f32 0.0, %v545
        %547 = vmatmul.f32.gmra.mxu0 %v484
        %v548 = vpop.f32.mrf.mxu0
        %v549 = vadd.f32 0.0, %v548
        %550 = vmatmul.f32.gmra.mxu0 %v487
        %v551 = vpop.f32.mrf.mxu0
        %v552 = vadd.f32 0.0, %v551
        %553 = vmatmul.f32.gmra.mxu0 %v490
        %v554 = vpop.f32.mrf.mxu0
        %v555 = vadd.f32 0.0, %v554
        %556 = vmatmul.f32.gmra.mxu0 %v493
        %v557 = vpop.f32.mrf.mxu0
        %v558 = vadd.f32 0.0, %v557
        %559 = vdwg.mxu0
        %vm560 = vcmask 523264
        %v561 = vsel %vm560, %v537, -inf
        %562 = vmax.xlane.f32.xlu0 %v561
        %v563 = vpop.xlane.xlu0 %562
        %v564 = vsel %vm560, %v540, -inf
        %565 = vmax.xlane.f32.xlu0 %v564
        %v566 = vpop.xlane.xlu0 %565
        %v567 = vsel %vm560, %v543, -inf
        %568 = vmax.xlane.f32.xlu0 %v567
        %v569 = vpop.xlane.xlu0 %568
        %v570 = vsel %vm560, %v546, -inf
        %571 = vmax.xlane.f32.xlu0 %v570
        %v572 = vpop.xlane.xlu0 %571
        %v573 = vsel %vm560, %v549, -inf
        %574 = vmax.xlane.f32.xlu0 %v573
        %v575 = vpop.xlane.xlu0 %574
        %v576 = vsel %vm560, %v552, -inf
        %577 = vmax.xlane.f32.xlu0 %v576
        %v578 = vpop.xlane.xlu0 %577
        %v579 = vsel %vm560, %v555, -inf
        %580 = vmax.xlane.f32.xlu0 %v579
        %v581 = vpop.xlane.xlu0 %580
        %v582 = vsel %vm560, %v558, -inf
        %583 = vmax.xlane.f32.xlu0 %v582
        %v584 = vpop.xlane.xlu0 %583
        %v585 = vsub.f32 %v537, %v563
        %v586 = vsub.f32 %v540, %v566
        %v587 = vsub.f32 %v543, %v569
        %v588 = vsub.f32 %v546, %v572
        %v589 = vsub.f32 %v549, %v575
        %v590 = vsub.f32 %v552, %v578
        %v591 = vsub.f32 %v555, %v581
        %v592 = vsub.f32 %v558, %v584
        %v593 = vmul.f32 %v585, 1.442695
        %v594 = vpow.pop %v593
        %v595 = vmul.f32 %v586, 1.442695
        %v596 = vpow.pop %v595
        %v597 = vmul.f32 %v587, 1.442695
        %v598 = vpow.pop %v597
        %v599 = vmul.f32 %v588, 1.442695
        %v600 = vpow.pop %v599
        %v601 = vmul.f32 %v589, 1.442695
        %v602 = vpow.pop %v601
        %v603 = vmul.f32 %v590, 1.442695
        %v604 = vpow.pop %v603
        %v605 = vmul.f32 %v591, 1.442695
        %v606 = vpow.pop %v605
        %v607 = vmul.f32 %v592, 1.442695
        %v608 = vpow.pop %v607
        %609 = vst.msk [vmem:[%s341] sm:$0xff] %vm560, %v594
        %610 = vst.msk [vmem:[%s341 + $0x8] sm:$0xff] %vm560, %v596
        %611 = vst.msk [vmem:[%s341 + $0x10] sm:$0xff] %vm560, %v598
        %612 = vst.msk [vmem:[%s341 + $0x18] sm:$0xff] %vm560, %v600
        %613 = vst.msk [vmem:[%s341 + $0x20] sm:$0xff] %vm560, %v602
        %614 = vst.msk [vmem:[%s341 + $0x28] sm:$0xff] %vm560, %v604
        %615 = vst.msk [vmem:[%s341 + $0x30] sm:$0xff] %vm560, %v606
        %616 = vst.msk [vmem:[%s341 + $0x38] sm:$0xff] %vm560, %v608
        %v617 = vsel %vm560, %v594, 0.0
        %618 = vadd.xlane.f32.xlu0 %v617
        %v619 = vpop.xlane.xlu0 %618
        %v620 = vsel %vm560, %v596, 0.0
        %621 = vadd.xlane.f32.xlu0 %v620
        %v622 = vpop.xlane.xlu0 %621
        %v623 = vsel %vm560, %v598, 0.0
        %624 = vadd.xlane.f32.xlu0 %v623
        %v625 = vpop.xlane.xlu0 %624
        %v626 = vsel %vm560, %v600, 0.0
        %627 = vadd.xlane.f32.xlu0 %v626
        %v628 = vpop.xlane.xlu0 %627
        %v629 = vsel %vm560, %v602, 0.0
        %630 = vadd.xlane.f32.xlu0 %v629
        %v631 = vpop.xlane.xlu0 %630
        %v632 = vsel %vm560, %v604, 0.0
        %633 = vadd.xlane.f32.xlu0 %v632
        %v634 = vpop.xlane.xlu0 %633
        %v635 = vsel %vm560, %v606, 0.0
        %636 = vadd.xlane.f32.xlu0 %v635
        %v637 = vpop.xlane.xlu0 %636
        %v638 = vsel %vm560, %v608, 0.0
        %639 = vadd.xlane.f32.xlu0 %v638
        %v640 = vpop.xlane.xlu0 %639
        %v641 = vrcp.pop %v619
        %v642 = vmul.f32 %v619, %v641
        %v643 = vsub.f32 1.0, %v642
        %v644 = vmul.f32 %v641, %v643
        %v645 = vadd.f32 %v641, %v644
        %vm646 = vweird.f32 %v619
        %vm647 = vweird.f32 %v641
        %vm648 = vmor %vm646, %vm647
        %v649 = vsel %vm648, %v641, %v645
        %v650 = vand.u32 2147483647, %v619
        %vm651 = vcmp.eq.f32.partialorder %v650, 8.507059e+37
        %v652 = vand.u32 %v619, 2147483648
        %v653 = vor.u32 1.1754944e-38, %v652
        %v654 = vsel %vm651, %v653, %v649
        %v655 = vrcp.pop %v622
        %v656 = vmul.f32 %v622, %v655
        %v657 = vsub.f32 1.0, %v656
        %v658 = vmul.f32 %v655, %v657
        %v659 = vadd.f32 %v655, %v658
        %vm660 = vweird.f32 %v622
        %vm661 = vweird.f32 %v655
        %vm662 = vmor %vm660, %vm661
        %v663 = vsel %vm662, %v655, %v659
        %v664 = vand.u32 2147483647, %v622
        %vm665 = vcmp.eq.f32.partialorder %v664, 8.507059e+37
        %v666 = vand.u32 %v622, 2147483648
        %v667 = vor.u32 1.1754944e-38, %v666
        %v668 = vsel %vm665, %v667, %v663
        %v669 = vrcp.pop %v625
        %v670 = vmul.f32 %v625, %v669
        %v671 = vsub.f32 1.0, %v670
        %v672 = vmul.f32 %v669, %v671
        %v673 = vadd.f32 %v669, %v672
        %vm674 = vweird.f32 %v625
        %vm675 = vweird.f32 %v669
        %vm676 = vmor %vm674, %vm675
        %v677 = vsel %vm676, %v669, %v673
        %v678 = vand.u32 2147483647, %v625
        %vm679 = vcmp.eq.f32.partialorder %v678, 8.507059e+37
        %v680 = vand.u32 %v625, 2147483648
        %v681 = vor.u32 1.1754944e-38, %v680
        %v682 = vsel %vm679, %v681, %v677
        %v683 = vrcp.pop %v628
        %v684 = vmul.f32 %v628, %v683
        %v685 = vsub.f32 1.0, %v684
        %v686 = vmul.f32 %v683, %v685
        %v687 = vadd.f32 %v683, %v686
        %vm688 = vweird.f32 %v628
        %vm689 = vweird.f32 %v683
        %vm690 = vmor %vm688, %vm689
        %v691 = vsel %vm690, %v683, %v687
        %v692 = vand.u32 2147483647, %v628
        %vm693 = vcmp.eq.f32.partialorder %v692, 8.507059e+37
        %v694 = vand.u32 %v628, 2147483648
        %v695 = vor.u32 1.1754944e-38, %v694
        %v696 = vsel %vm693, %v695, %v691
        %v697 = vrcp.pop %v631
        %v698 = vmul.f32 %v631, %v697
        %v699 = vsub.f32 1.0, %v698
        %v700 = vmul.f32 %v697, %v699
        %v701 = vadd.f32 %v697, %v700
        %vm702 = vweird.f32 %v631
        %vm703 = vweird.f32 %v697
        %vm704 = vmor %vm702, %vm703
        %v705 = vsel %vm704, %v697, %v701
        %v706 = vand.u32 2147483647, %v631
        %vm707 = vcmp.eq.f32.partialorder %v706, 8.507059e+37
        %v708 = vand.u32 %v631, 2147483648
        %v709 = vor.u32 1.1754944e-38, %v708
        %v710 = vsel %vm707, %v709, %v705
        %v711 = vrcp.pop %v634
        %v712 = vmul.f32 %v634, %v711
        %v713 = vsub.f32 1.0, %v712
        %v714 = vmul.f32 %v711, %v713
        %v715 = vadd.f32 %v711, %v714
        %vm716 = vweird.f32 %v634
        %vm717 = vweird.f32 %v711
        %vm718 = vmor %vm716, %vm717
        %v719 = vsel %vm718, %v711, %v715
        %v720 = vand.u32 2147483647, %v634
        %vm721 = vcmp.eq.f32.partialorder %v720, 8.507059e+37
        %v722 = vand.u32 %v634, 2147483648
        %v723 = vor.u32 1.1754944e-38, %v722
        %v724 = vsel %vm721, %v723, %v719
        %v725 = vrcp.pop %v637
        %v726 = vmul.f32 %v637, %v725
        %v727 = vsub.f32 1.0, %v726
        %v728 = vmul.f32 %v725, %v727
        %v729 = vadd.f32 %v725, %v728
        %vm730 = vweird.f32 %v637
        %vm731 = vweird.f32 %v725
        %vm732 = vmor %vm730, %vm731
        %v733 = vsel %vm732, %v725, %v729
        %v734 = vand.u32 2147483647, %v637
        %vm735 = vcmp.eq.f32.partialorder %v734, 8.507059e+37
        %v736 = vand.u32 %v637, 2147483648
        %v737 = vor.u32 1.1754944e-38, %v736
        %v738 = vsel %vm735, %v737, %v733
        %v739 = vrcp.pop %v640
        %v740 = vmul.f32 %v640, %v739
        %v741 = vsub.f32 1.0, %v740
        %v742 = vmul.f32 %v739, %v741
        %v743 = vadd.f32 %v739, %v742
        %vm744 = vweird.f32 %v640
        %vm745 = vweird.f32 %v739
        %vm746 = vmor %vm744, %vm745
        %v747 = vsel %vm746, %v739, %v743
        %v748 = vand.u32 2147483647, %v640
        %vm749 = vcmp.eq.f32.partialorder %v748, 8.507059e+37
        %v750 = vand.u32 %v640, 2147483648
        %v751 = vor.u32 1.1754944e-38, %v750
        %v752 = vsel %vm749, %v751, %v747
        %v753 = vld [vmem:[%s341] sm:$0xff]
        %v754 = vld [vmem:[%s341 + $0x8] sm:$0xff]
        %v755 = vld [vmem:[%s341 + $0x10] sm:$0xff]
        %v756 = vld [vmem:[%s341 + $0x18] sm:$0xff]
        %v757 = vld [vmem:[%s341 + $0x20] sm:$0xff]
        %v758 = vld [vmem:[%s341 + $0x28] sm:$0xff]
        %v759 = vld [vmem:[%s341 + $0x30] sm:$0xff]
        %v760 = vld [vmem:[%s341 + $0x38] sm:$0xff]
        %v761 = vmul.f32 %v753, %v654
        %v762 = vmul.f32 %v754, %v668
        %v763 = vmul.f32 %v755, %v682
        %v764 = vmul.f32 %v756, %v696
        %v765 = vmul.f32 %v757, %v710
        %v766 = vmul.f32 %v758, %v724
        %v767 = vmul.f32 %v759, %v738
        %v768 = vmul.f32 %v760, %v752
        %769 = vst.msk [vmem:[%s341] sm:$0xff] %vm560, %v761
        %770 = vst.msk [vmem:[%s341 + $0x8] sm:$0xff] %vm560, %v762
        %771 = vst.msk [vmem:[%s341 + $0x10] sm:$0xff] %vm560, %v763
        %772 = vst.msk [vmem:[%s341 + $0x18] sm:$0xff] %vm560, %v764
        %773 = vst.msk [vmem:[%s341 + $0x20] sm:$0xff] %vm560, %v765
        %774 = vst.msk [vmem:[%s341 + $0x28] sm:$0xff] %vm560, %v766
        %775 = vst.msk [vmem:[%s341 + $0x30] sm:$0xff] %vm560, %v767
        %776 = vst.msk [vmem:[%s341 + $0x38] sm:$0xff] %vm560, %v768
        %v777 = vld [vmem:[%s341] sm:$0xff]
        %v778 = vld [vmem:[%s341 + $0x8] sm:$0xff]
        %v779 = vld [vmem:[%s341 + $0x10] sm:$0xff]
        %v780 = vld [vmem:[%s341 + $0x18] sm:$0xff]
        %v781 = vld [vmem:[%s341 + $0x20] sm:$0xff]
        %v782 = vld [vmem:[%s341 + $0x28] sm:$0xff]
        %v783 = vld [vmem:[%s341 + $0x30] sm:$0xff]
        %v784 = vld [vmem:[%s341 + $0x38] sm:$0xff]
        %v785 = vpack.c.bf16 %v778, %v777
        %v786 = vpack.c.bf16 %v780, %v779
        %v787 = vpack.c.bf16 %v782, %v781
        %v788 = vpack.c.bf16 %v784, %v783
        %v797 = vunpack.c.l.b16 %v390
        %v798 = vunpack.c.l.b16 %v391
        %v799 = vunpack.c.l.b16 %v392
        %v800 = vunpack.c.l.b16 %v393
        %v801 = vunpack.c.l.b16 %v394
        %v802 = vunpack.c.l.b16 %v395
        %v803 = vunpack.c.l.b16 %v396
        %v804 = vunpack.c.l.b16 %v397
        %v805 = vpack.c.b16 %v798, %v797
        %v806 = vpack.c.b16 %v800, %v799
        %v807 = vpack.c.b16 %v802, %v801
        %v808 = vpack.c.b16 %v804, %v803
        %v814 = vsel %vm560, %v785, 0
        %v817 = vsel %vm560, %v786, 0
        %v820 = vsel %vm560, %v787, 0
        %v823 = vsel %vm560, %v788, 0
        %825 = vmatpush.bf16.msra.mxu0 0
        %826 = vmatpush.bf16.msra.mxu0 0
        %827 = vmatpush.bf16.msra.mxu0 0
        %828 = vmatpush.bf16.msra.mxu0 0
        %829 = vmatpush.bf16.msra.mxu0 %v808
        %830 = vmatpush.bf16.msra.mxu0 %v807
        %831 = vmatpush.bf16.msra.mxu0 %v806
        %832 = vmatpush.bf16.msra.mxu0 %v805
        %833 = vmatmul.bf16.gmra.mxu0 %v814
        %v834 = vpop.f32.mrf.mxu0
        %v835 = vadd.f32 0.0, %v834
        %v836 = vpop.f32.mrf.mxu0
        %v837 = vadd.f32 0.0, %v836
        %838 = vmatmul.bf16.gmra.mxu0 %v817
        %v839 = vpop.f32.mrf.mxu0
        %v840 = vadd.f32 0.0, %v839
        %v841 = vpop.f32.mrf.mxu0
        %v842 = vadd.f32 0.0, %v841
        %843 = vmatmul.bf16.gmra.mxu0 %v820
        %v844 = vpop.f32.mrf.mxu0
        %v845 = vadd.f32 0.0, %v844
        %v846 = vpop.f32.mrf.mxu0
        %v847 = vadd.f32 0.0, %v846
        %848 = vmatmul.bf16.gmra.mxu0 %v823
        %v849 = vpop.f32.mrf.mxu0
        %v850 = vadd.f32 0.0, %v849
        %v851 = vpop.f32.mrf.mxu0
        %v852 = vadd.f32 0.0, %v851
        %853 = vdwg.mxu0
        %s854 = sld [smem:[#allocation2]]
        %v855 = vstv %s854
        %v856 = vmul.f32 %v855, %v835
        %v857 = vmul.f32 %v855, %v837
        %v858 = vmul.f32 %v855, %v840
        %v859 = vmul.f32 %v855, %v842
        %v860 = vmul.f32 %v855, %v845
        %v861 = vmul.f32 %v855, %v847
        %v862 = vmul.f32 %v855, %v850
        %v863 = vmul.f32 %v855, %v852
        %v864 = vadd.f32 %v856, %v374
        %v865 = vadd.f32 %v857, %v375
        %v866 = vadd.f32 %v858, %v376
        %v867 = vadd.f32 %v859, %v377
        %v868 = vadd.f32 %v860, %v378
        %v869 = vadd.f32 %v861, %v379
        %v870 = vadd.f32 %v862, %v380
        %v871 = vadd.f32 %v863, %v381
        %872 = vst.msk [vmem:[%s370] sm:$0xff] %vm404, %v864
        %873 = vst.msk [vmem:[%s370 + $0x8] sm:$0xff] %vm404, %v865
        %874 = vst.msk [vmem:[%s370 + $0x10] sm:$0xff] %vm404, %v866
        %875 = vst.msk [vmem:[%s370 + $0x18] sm:$0xff] %vm404, %v867
        %876 = vst.msk [vmem:[%s370 + $0x20] sm:$0xff] %vm404, %v868
        %877 = vst.msk [vmem:[%s370 + $0x28] sm:$0xff] %vm404, %v869
        %878 = vst.msk [vmem:[%s370 + $0x30] sm:$0xff] %vm404, %v870
        %879 = vst.msk [vmem:[%s370 + $0x38] sm:$0xff] %vm404, %v871
        %s880 = smul.u32 8, %s28
        %p881 = scmp.lt.s32.totalorder %s27, 1
        %s882 = scalar_select %p881, %s27, 1
        %p883 = scmp.lt.s32.totalorder %s880, 7
        %s884 = scalar_select %p883, %s880, 7
        %s885 = smul.addr %s882, 8
        %s886 = sadd.s32 %s884, %s885
        %s887 = smul.addr %s886, 8
        %s888 = scalar_lea.vmem %s6, %s887
        %s889 = sand.u32 %s216, 1
        %s890 = scalar_lea.sflag [#allocation4], %s889
        %s891 = sand.u32 %s216, 1
        %s892 = smul.addr %s891, 64
        %s893 = scalar_lea.vmem [#allocation3], %s892
        // Predicated region
        $region45: #{tpu_custom_call.1} parent=43 // pred_check
          %p894 = pneg %p198
        $region46: #{tpu_custom_call.1} parent=43 // pred_check_branch
          %896 = sbr.rel (%p894) target = $region48
        $region47: #{tpu_custom_call.1} parent=43 // pred_region
          %s897 = smul.u32 8, %s28
        $region48: #{tpu_custom_call.1} parent=43 // pred_fallthru
          _
        // Predicated region
        $region49: #{tpu_custom_call.1} parent=43 // pred_check
          %p898 = pneg %p226
        $region50: #{tpu_custom_call.1} parent=43 // pred_check_branch
          %900 = sbr.rel (%p898) target = $region52
        $region51: #{tpu_custom_call.1} parent=43 // pred_region
          %s901 = smul.u32 8, %s28
          %903 = vsyncadd %s890, 0
          %s904 = smul.addr %s27, 8
          %s905 = sadd.s32 %s901, %s904
          %s906 = smul.addr %s905, 8
          %s907 = scalar_lea.hbm %s7, %s906
          %s908 = sshll.u32 %s893, 4
          %s909 = int_to_ptr.vmem [resolvable:$true] %s908
          %s910 = sshll.u32 %s907, 4
          %s911 = int_to_ptr.hbm [resolvable:$true] %s910
          %916 = dma.vmem_to_hbm [thread:$0]  %s909, 1024, %s911, %s890, 128, 128, 8
        $region52: #{tpu_custom_call.1} parent=43 // pred_fallthru
          _
      $region44: #{tpu_custom_call.1} parent=5 // pred_fallthru
        _
      %p917 = scmp.le.s32.totalorder 2, %s18
      // Predicated region
      $region53: #{tpu_custom_call.1} parent=5 // pred_check
        %p918 = pneg %p917
      $region54: #{tpu_custom_call.1} parent=5 // pred_check_branch
        %920 = sbr.rel (%p918) target = $region56
      $region55: #{tpu_custom_call.1} parent=5 // pred_region
        %s921 = ssub.s32 %s18, 2
        // Predicated region
        $region57: #{tpu_custom_call.1} parent=55 // pred_check
          %p922 = pneg %p204
        $region58: #{tpu_custom_call.1} parent=55 // pred_check_branch
          %924 = sbr.rel (%p922) target = $region60
        $region59: #{tpu_custom_call.1} parent=55 // pred_region
          %s925 = smul.u32 8, %s30
          %p926 = scmp.lt.s32.totalorder %s29, 1
          %s927 = scalar_select %p926, %s29, 1
          %p928 = scmp.lt.s32.totalorder %s925, 7
          %s929 = scalar_select %p928, %s925, 7
          %s930 = smul.addr %s927, 8
          %s931 = sadd.s32 %s929, %s930
          %s932 = smul.addr %s931, 8
          %s933 = scalar_lea.vmem %s6, %s932
        $region60: #{tpu_custom_call.1} parent=55 // pred_fallthru
          _
        // Predicated region
        $region61: #{tpu_custom_call.1} parent=55 // pred_check
          %p934 = pneg %p232
        $region62: #{tpu_custom_call.1} parent=55 // pred_check_branch
          %936 = sbr.rel (%p934) target = $region64
        $region63: #{tpu_custom_call.1} parent=55 // pred_region
          %s937 = sand.u32 %s217, 1
          %s938 = scalar_lea.sflag [#allocation4], %s937
          %s939 = sand.u32 %s217, 1
          %s940 = smul.addr %s939, 64
          %s941 = scalar_lea.vmem [#allocation3], %s940
          %943 = dma.done %s938, 1024
        $region64: #{tpu_custom_call.1} parent=55 // pred_fallthru
          _
      $region56: #{tpu_custom_call.1} parent=5 // pred_fallthru
        _
    $region6: #{tpu_custom_call.1} parent=1 // loop_footer
      %s22 = sadd.s32 1, %s18
    $region7: #{tpu_custom_call.1} parent=1 // loop_footer_branch
      %17 = sbr.rel target = $region3
    $region8: #{tpu_custom_call.1} parent=1 // loop_exit
      _
    %944 = vsyncpa [#allocation4], 1
    %s945 = scalar_lea.sflag [#allocation4], 1
    %946 = vsyncpa %s945, 1

</llo_original>
